<compile_context>
chip_gen: v7x
topology: tpu7x:2x2x1
jax: 0.10.0
libtpu: 0.0.40
codegen_flags: <defaults>
</compile_context>

<pallas_src>
import jax
import jax.numpy as jnp
from jax.experimental import pallas as pl
from jax.experimental.pallas import tpu as pltpu  # noqa: F401  (TPU backend import)


def _mm_unrolled(a, b):
    """(n,n) @ (n,n) as fully unrolled VPU broadcast-multiply-adds (no MXU).

    b[k:k+1, :] (a row) replicates along sublanes, which is cheap; the
    a[:, k:k+1] column factor replicates along lanes.  For the standalone 3x3
    case that lane replication is negligible vs. launch overhead; the batched
    lane-dense layout described in the module comment removes it entirely.
    """
    n = a.shape[1]
    acc = a[:, 0:1] * b[0:1, :]
    for k in range(1, n):
        acc = acc + a[:, k:k + 1] * b[k:k + 1, :]
    return acc


def _chain_mm_kernel(x1_ref, x2_ref, x3_ref, x4_ref, inp_ref, o_ref):
    # Each ref is a full (n, n) block resident in VMEM (one tiny DMA each).
    x1 = x1_ref[...].astype(jnp.float32)
    x2 = x2_ref[...].astype(jnp.float32)
    x3 = x3_ref[...].astype(jnp.float32)
    x4 = x4_ref[...].astype(jnp.float32)
    inp = inp_ref[...].astype(jnp.float32)

    v1 = _mm_unrolled(x1, x2)           # v1 = x1 @ x2
    v1 = x3 + _mm_unrolled(v1, x4)      # v1 = x3 + v1 @ x4
    v1 = _mm_unrolled(v1, inp)          # v1 = v1 @ inp
    o_ref[...] = v1.astype(o_ref.dtype)


@jax.jit
def chain_mm(x1, x2, x3, x4, inp):
    n = x1.shape[0]
    # Five separate full-array blocks: five ~36 B DMAs, no wrapper-side
    # repacking, no extra XLA kernels.
    full_block = pl.BlockSpec((n, n), lambda: (0, 0))
    flops = 3 * (2 * n * n * n) + n * n                 # 3 matmuls + bias add
    bytes_accessed = (5 * n * n + n * n) * 4            # 5 inputs + 1 output, f32
    return pl.pallas_call(
        _chain_mm_kernel,
        out_shape=jax.ShapeDtypeStruct((n, n), x1.dtype),
        grid=(),  # single program: the whole problem fits in a corner of one vreg
        in_specs=[full_block, full_block, full_block, full_block, full_block],
        out_specs=pl.BlockSpec((n, n), lambda: (0, 0)),
        cost_estimate=pl.CostEstimate(
            flops=flops, transcendentals=0, bytes_accessed=bytes_accessed
        ),
    )(x1, x2, x3, x4, inp)


def _reference(x1, x2, x3, x4, inp):
    v1 = x1 @ x2
    v1 = x3 + v1 @ x4
    return v1 @ inp


if __name__ == "__main__":
    key = jax.random.PRNGKey(0)
    k1, k2, k3, k4, k5 = jax.random.split(key, 5)
    n = 3  # shapes implied by the module: all operands are (3, 3)
    x1 = jax.random.normal(k1, (n, n), dtype=jnp.float32)
    x2 = jax.random.normal(k2, (n, n), dtype=jnp.float32)
    x3 = jax.random.normal(k3, (n, n), dtype=jnp.float32)
    x4 = jax.random.normal(k4, (n, n), dtype=jnp.float32)
    inp = jax.random.normal(k5, (n, n), dtype=jnp.float32)

    out = chain_mm(x1, x2, x3, x4, inp)
    jax.block_until_ready(out)

    ref = _reference(x1, x2, x3, x4, inp)
    assert jnp.allclose(out, ref, atol=1e-5, rtol=1e-5), (out, ref)
    print("KERNEL_OK")
</pallas_src>

<mosaic_0001>
module attributes {stable_mosaic.version = 11 : i64} {
  func.func @_chain_mm_kernel(%arg0: memref<3x3xf32, #tpu.memory_space<vmem>>, %arg1: memref<3x3xf32, #tpu.memory_space<vmem>>, %arg2: memref<3x3xf32, #tpu.memory_space<vmem>>, %arg3: memref<3x3xf32, #tpu.memory_space<vmem>>, %arg4: memref<3x3xf32, #tpu.memory_space<vmem>>, %arg5: memref<3x3xf32, #tpu.memory_space<vmem>>) attributes {dimension_semantics = [], scalar_prefetch = 0 : i64, scratch_operands = 0 : i64, tpu.core_type = #tpu.core_type<tc>} {
    %c0 = arith.constant 0 : index
    %c0_0 = arith.constant 0 : index
    %0 = vector.load %arg0[%c0, %c0_0] : memref<3x3xf32, #tpu.memory_space<vmem>>, vector<3x3xf32>
    %c0_1 = arith.constant 0 : index
    %c0_2 = arith.constant 0 : index
    %1 = vector.load %arg1[%c0_1, %c0_2] : memref<3x3xf32, #tpu.memory_space<vmem>>, vector<3x3xf32>
    %c0_3 = arith.constant 0 : index
    %c0_4 = arith.constant 0 : index
    %2 = vector.load %arg2[%c0_3, %c0_4] : memref<3x3xf32, #tpu.memory_space<vmem>>, vector<3x3xf32>
    %c0_5 = arith.constant 0 : index
    %c0_6 = arith.constant 0 : index
    %3 = vector.load %arg3[%c0_5, %c0_6] : memref<3x3xf32, #tpu.memory_space<vmem>>, vector<3x3xf32>
    %c0_7 = arith.constant 0 : index
    %c0_8 = arith.constant 0 : index
    %4 = vector.load %arg4[%c0_7, %c0_8] : memref<3x3xf32, #tpu.memory_space<vmem>>, vector<3x3xf32>
    %5 = vector.extract_strided_slice %0 {offsets = [0, 0], sizes = [3, 1], strides = [1, 1]} : vector<3x3xf32> to vector<3x1xf32>
    %6 = vector.extract_strided_slice %1 {offsets = [0, 0], sizes = [1, 3], strides = [1, 1]} : vector<3x3xf32> to vector<1x3xf32>
    %7 = vector.broadcast %5 : vector<3x1xf32> to vector<3x3xf32>
    %8 = vector.broadcast %6 : vector<1x3xf32> to vector<3x3xf32>
    %9 = arith.mulf %7, %8 : vector<3x3xf32>
    %10 = vector.extract_strided_slice %0 {offsets = [0, 1], sizes = [3, 1], strides = [1, 1]} : vector<3x3xf32> to vector<3x1xf32>
    %11 = vector.extract_strided_slice %1 {offsets = [1, 0], sizes = [1, 3], strides = [1, 1]} : vector<3x3xf32> to vector<1x3xf32>
    %12 = vector.broadcast %10 : vector<3x1xf32> to vector<3x3xf32>
    %13 = vector.broadcast %11 : vector<1x3xf32> to vector<3x3xf32>
    %14 = arith.mulf %12, %13 : vector<3x3xf32>
    %15 = arith.addf %9, %14 : vector<3x3xf32>
    %16 = vector.extract_strided_slice %0 {offsets = [0, 2], sizes = [3, 1], strides = [1, 1]} : vector<3x3xf32> to vector<3x1xf32>
    %17 = vector.extract_strided_slice %1 {offsets = [2, 0], sizes = [1, 3], strides = [1, 1]} : vector<3x3xf32> to vector<1x3xf32>
    %18 = vector.broadcast %16 : vector<3x1xf32> to vector<3x3xf32>
    %19 = vector.broadcast %17 : vector<1x3xf32> to vector<3x3xf32>
    %20 = arith.mulf %18, %19 : vector<3x3xf32>
    %21 = arith.addf %15, %20 : vector<3x3xf32>
    %22 = vector.extract_strided_slice %21 {offsets = [0, 0], sizes = [3, 1], strides = [1, 1]} : vector<3x3xf32> to vector<3x1xf32>
    %23 = vector.extract_strided_slice %3 {offsets = [0, 0], sizes = [1, 3], strides = [1, 1]} : vector<3x3xf32> to vector<1x3xf32>
    %24 = vector.broadcast %22 : vector<3x1xf32> to vector<3x3xf32>
    %25 = vector.broadcast %23 : vector<1x3xf32> to vector<3x3xf32>
    %26 = arith.mulf %24, %25 : vector<3x3xf32>
    %27 = vector.extract_strided_slice %21 {offsets = [0, 1], sizes = [3, 1], strides = [1, 1]} : vector<3x3xf32> to vector<3x1xf32>
    %28 = vector.extract_strided_slice %3 {offsets = [1, 0], sizes = [1, 3], strides = [1, 1]} : vector<3x3xf32> to vector<1x3xf32>
    %29 = vector.broadcast %27 : vector<3x1xf32> to vector<3x3xf32>
    %30 = vector.broadcast %28 : vector<1x3xf32> to vector<3x3xf32>
    %31 = arith.mulf %29, %30 : vector<3x3xf32>
    %32 = arith.addf %26, %31 : vector<3x3xf32>
    %33 = vector.extract_strided_slice %21 {offsets = [0, 2], sizes = [3, 1], strides = [1, 1]} : vector<3x3xf32> to vector<3x1xf32>
    %34 = vector.extract_strided_slice %3 {offsets = [2, 0], sizes = [1, 3], strides = [1, 1]} : vector<3x3xf32> to vector<1x3xf32>
    %35 = vector.broadcast %33 : vector<3x1xf32> to vector<3x3xf32>
    %36 = vector.broadcast %34 : vector<1x3xf32> to vector<3x3xf32>
    %37 = arith.mulf %35, %36 : vector<3x3xf32>
    %38 = arith.addf %32, %37 : vector<3x3xf32>
    %39 = arith.addf %2, %38 : vector<3x3xf32>
    %40 = vector.extract_strided_slice %39 {offsets = [0, 0], sizes = [3, 1], strides = [1, 1]} : vector<3x3xf32> to vector<3x1xf32>
    %41 = vector.extract_strided_slice %4 {offsets = [0, 0], sizes = [1, 3], strides = [1, 1]} : vector<3x3xf32> to vector<1x3xf32>
    %42 = vector.broadcast %40 : vector<3x1xf32> to vector<3x3xf32>
    %43 = vector.broadcast %41 : vector<1x3xf32> to vector<3x3xf32>
    %44 = arith.mulf %42, %43 : vector<3x3xf32>
    %45 = vector.extract_strided_slice %39 {offsets = [0, 1], sizes = [3, 1], strides = [1, 1]} : vector<3x3xf32> to vector<3x1xf32>
    %46 = vector.extract_strided_slice %4 {offsets = [1, 0], sizes = [1, 3], strides = [1, 1]} : vector<3x3xf32> to vector<1x3xf32>
    %47 = vector.broadcast %45 : vector<3x1xf32> to vector<3x3xf32>
    %48 = vector.broadcast %46 : vector<1x3xf32> to vector<3x3xf32>
    %49 = arith.mulf %47, %48 : vector<3x3xf32>
    %50 = arith.addf %44, %49 : vector<3x3xf32>
    %51 = vector.extract_strided_slice %39 {offsets = [0, 2], sizes = [3, 1], strides = [1, 1]} : vector<3x3xf32> to vector<3x1xf32>
    %52 = vector.extract_strided_slice %4 {offsets = [2, 0], sizes = [1, 3], strides = [1, 1]} : vector<3x3xf32> to vector<1x3xf32>
    %53 = vector.broadcast %51 : vector<3x1xf32> to vector<3x3xf32>
    %54 = vector.broadcast %52 : vector<1x3xf32> to vector<3x3xf32>
    %55 = arith.mulf %53, %54 : vector<3x3xf32>
    %56 = arith.addf %50, %55 : vector<3x3xf32>
    %c0_9 = arith.constant 0 : index
    %c0_10 = arith.constant 0 : index
    %57 = vector.load %arg5[%c0_9, %c0_10] : memref<3x3xf32, #tpu.memory_space<vmem>>, vector<3x3xf32>
    tpu.vector_store %arg5[%c0_9, %c0_10], %56 {strides = array<i32>} : memref<3x3xf32, #tpu.memory_space<vmem>>, vector<3x3xf32>,
    return
  }
}

</mosaic_0001>

<llo_original>
// kernel: chain_mm.1
$region0: #{chain_mm.1}
  #allocation0 [shape = 'u32[]', space=smem, size = 0x4, offset = 0x4, fixed_abs, tag = 'smem constant byte address 0x4 - core index']
  #allocation1 [shape = 'u32[144,128]{1,0:T(1,128)}', space=vmem, size = 0x12000, scoped, tag = 'internal scratch']
  %s0 = inlined_call_operand.hbm [shape: f32[3,3], index: 0, kind: input, shape index: {}]
  %s1 = inlined_call_operand.hbm [shape: f32[3,3], index: 1, kind: input, shape index: {}]
  %s2 = inlined_call_operand.vmem [shape: f32[3,3], index: 2, kind: input, shape index: {}]
  %s3 = inlined_call_operand.vmem [shape: f32[3,3], index: 3, kind: input, shape index: {}]
  %s4 = inlined_call_operand.vmem [shape: f32[3,3], index: 4, kind: input, shape index: {}]
  %s5 = inlined_call_operand.hbm [shape: f32[3,3], index: 5, kind: output, shape index: {}]
  %s6 = sld [smem:[#allocation0]]
  $region38: #{chain_mm.1} parent=0
    _
  %s8 = ssub.s32 1, %s6
  %s9 = scalar_select 0, %s8, %s6
  $region1: #{chain_mm.1} parent=0
    #allocation2 [shape = 'u8[2048]{0}', space=vmem, size = 0x800, scoped, tag = 'input window, operand 0, single buffered']
    #allocation3 [shape = 's32[1]{0}', space=sflag, size = 0x4, scoped, tag = 'scoped memory for chain_mm.1']
    #allocation4 [shape = 's32[1]{0}', space=sflag, size = 0x4, scoped, tag = 'scoped memory for chain_mm.1']
    #allocation5 [shape = 'u8[2048]{0}', space=vmem, size = 0x800, scoped, tag = 'input window, operand 1, single buffered']
    #allocation6 [shape = 's32[1]{0}', space=sflag, size = 0x4, scoped, tag = 'scoped memory for chain_mm.1']
    #allocation7 [shape = 'u8[2048]{0}', space=vmem, size = 0x800, scoped, tag = 'output window, operand 0, single buffered']
    %10 = vsyncpa [#allocation3], 0
    %11 = vsyncpa [#allocation6], 0
    %12 = vsyncpa [#allocation4], 0
    // Predicated region
    $region2: #{chain_mm.1} parent=1 // pred_check
      _
    $region3: #{chain_mm.1} parent=1 // pred_check_branch
      %14 = sbr.rel (0) target = $region5
    $region4: #{chain_mm.1} parent=1 // pred_region
      %s16 = ssub.s32 64, 64
      %17 = vsyncadd [#allocation3], %s16
      %s19 = sshll.u32 [#allocation2], 4
      %s20 = int_to_ptr.vmem [resolvable:$true] %s19
      %22 = dma.hbm_to_vmem [thread:$0]  %s0, 64, %s20, [#allocation3]
    $region5: #{chain_mm.1} parent=1 // pred_fallthru
      _
    // Predicated region
    $region6: #{chain_mm.1} parent=1 // pred_check
      _
    $region7: #{chain_mm.1} parent=1 // pred_check_branch
      %24 = sbr.rel (0) target = $region9
    $region8: #{chain_mm.1} parent=1 // pred_region
      %s26 = ssub.s32 64, 64
      %27 = vsyncadd [#allocation6], %s26
      %s29 = sshll.u32 [#allocation5], 4
      %s30 = int_to_ptr.vmem [resolvable:$true] %s29
      %32 = dma.hbm_to_vmem [thread:$0]  %s1, 64, %s30, [#allocation6]
    $region9: #{chain_mm.1} parent=1 // pred_fallthru
      _
    // Predicated region
    $region10: #{chain_mm.1} parent=1 // pred_check
      _
    $region11: #{chain_mm.1} parent=1 // pred_check_branch
      %34 = sbr.rel (0) target = $region13
    $region12: #{chain_mm.1} parent=1 // pred_region
      _
    $region13: #{chain_mm.1} parent=1 // pred_fallthru
      _
    // Predicated region
    $region14: #{chain_mm.1} parent=1 // pred_check
      _
    $region15: #{chain_mm.1} parent=1 // pred_check_branch
      %36 = sbr.rel (0) target = $region17
    $region16: #{chain_mm.1} parent=1 // pred_region
      _
    $region17: #{chain_mm.1} parent=1 // pred_fallthru
      _
    // Predicated region
    $region18: #{chain_mm.1} parent=1 // pred_check
      _
    $region19: #{chain_mm.1} parent=1 // pred_check_branch
      %38 = sbr.rel (0) target = $region21
    $region20: #{chain_mm.1} parent=1 // pred_region
      _
    $region21: #{chain_mm.1} parent=1 // pred_fallthru
      _
    // Predicated region
    $region22: #{chain_mm.1} parent=1 // pred_check
      _
    $region23: #{chain_mm.1} parent=1 // pred_check_branch
      %40 = sbr.rel (0) target = $region25
    $region24: #{chain_mm.1} parent=1 // pred_region
      %41 = dma.done [#allocation3], 64
    $region25: #{chain_mm.1} parent=1 // pred_fallthru
      _
    // Predicated region
    $region26: #{chain_mm.1} parent=1 // pred_check
      _
    $region27: #{chain_mm.1} parent=1 // pred_check_branch
      %43 = sbr.rel (0) target = $region29
    $region28: #{chain_mm.1} parent=1 // pred_region
      %44 = dma.done [#allocation6], 64
    $region29: #{chain_mm.1} parent=1 // pred_fallthru
      _
    %v45 = vld [vmem:[#allocation2] sm:$0x7]
    %v46 = vld [vmem:[#allocation5] sm:$0x7]
    %v47 = vld [vmem:[%s2] sm:$0x7]
    %v48 = vld [vmem:[%s3] sm:$0x7]
    %v49 = vld [vmem:[%s4] sm:$0x7]
    %51 = vset.pattern.permute.xlu0 0
    %52 = vperm.xlu0 %51, %v45
    %v53 = vpop.permute.xlu0 %52
    %v55 = vlaneseq
    %v56 = vshrl.u32 %v55, 7
    %v57 = vsub.s32 0, %v56
    %v58 = vrot.slane %v46, %v57
    %v59 = vmul.f32 %v53, %v58
    %60 = vset.pattern.permute.xlu0 1
    %61 = vperm.xlu0 %60, %v45
    %v62 = vpop.permute.xlu0 %61
    %v64 = vlaneseq
    %v65 = vshrl.u32 %v64, 7
    %v66 = vsub.s32 1, %v65
    %v67 = vrot.slane %v46, %v66
    %v68 = vmul.f32 %v62, %v67
    %v69 = vadd.f32 %v59, %v68
    %70 = vset.pattern.permute.xlu0 2
    %71 = vperm.xlu0 %70, %v45
    %v72 = vpop.permute.xlu0 %71
    %v74 = vlaneseq
    %v75 = vshrl.u32 %v74, 7
    %v76 = vsub.s32 2, %v75
    %v77 = vrot.slane %v46, %v76
    %v78 = vmul.f32 %v72, %v77
    %v79 = vadd.f32 %v69, %v78
    %81 = vset.pattern.permute.xlu0 0
    %82 = vperm.xlu0 %81, %v79
    %v83 = vpop.permute.xlu0 %82
    %v85 = vlaneseq
    %v86 = vshrl.u32 %v85, 7
    %v87 = vsub.s32 0, %v86
    %v88 = vrot.slane %v48, %v87
    %v89 = vmul.f32 %v83, %v88
    %90 = vset.pattern.permute.xlu0 1
    %91 = vperm.xlu0 %90, %v79
    %v92 = vpop.permute.xlu0 %91
    %v94 = vlaneseq
    %v95 = vshrl.u32 %v94, 7
    %v96 = vsub.s32 1, %v95
    %v97 = vrot.slane %v48, %v96
    %v98 = vmul.f32 %v92, %v97
    %v99 = vadd.f32 %v89, %v98
    %100 = vset.pattern.permute.xlu0 2
    %101 = vperm.xlu0 %100, %v79
    %v102 = vpop.permute.xlu0 %101
    %v104 = vlaneseq
    %v105 = vshrl.u32 %v104, 7
    %v106 = vsub.s32 2, %v105
    %v107 = vrot.slane %v48, %v106
    %v108 = vmul.f32 %v102, %v107
    %v109 = vadd.f32 %v99, %v108
    %v110 = vadd.f32 %v47, %v109
    %112 = vset.pattern.permute.xlu0 0
    %113 = vperm.xlu0 %112, %v110
    %v114 = vpop.permute.xlu0 %113
    %v116 = vlaneseq
    %v117 = vshrl.u32 %v116, 7
    %v118 = vsub.s32 0, %v117
    %v119 = vrot.slane %v49, %v118
    %v120 = vmul.f32 %v114, %v119
    %121 = vset.pattern.permute.xlu0 1
    %122 = vperm.xlu0 %121, %v110
    %v123 = vpop.permute.xlu0 %122
    %v125 = vlaneseq
    %v126 = vshrl.u32 %v125, 7
    %v127 = vsub.s32 1, %v126
    %v128 = vrot.slane %v49, %v127
    %v129 = vmul.f32 %v123, %v128
    %v130 = vadd.f32 %v120, %v129
    %131 = vset.pattern.permute.xlu0 2
    %132 = vperm.xlu0 %131, %v110
    %v133 = vpop.permute.xlu0 %132
    %v135 = vlaneseq
    %v136 = vshrl.u32 %v135, 7
    %v137 = vsub.s32 2, %v136
    %v138 = vrot.slane %v49, %v137
    %v139 = vmul.f32 %v133, %v138
    %v140 = vadd.f32 %v130, %v139
    %vm141 = vcmask 18432
    %142 = vst.msk [vmem:[#allocation7] sm:$0x7] %vm141, %v140
    // Predicated region
    $region30: #{chain_mm.1} parent=1 // pred_check
      _
    $region31: #{chain_mm.1} parent=1 // pred_check_branch
      %144 = sbr.rel (0) target = $region33
    $region32: #{chain_mm.1} parent=1 // pred_region
      %s146 = ssub.s32 64, 64
      %147 = vsyncadd [#allocation4], %s146
      %s149 = sshll.u32 [#allocation7], 4
      %s150 = int_to_ptr.vmem [resolvable:$true] %s149
      %152 = dma.vmem_to_hbm [thread:$0]  %s150, 64, %s5, [#allocation4]
    $region33: #{chain_mm.1} parent=1 // pred_fallthru
      _
    // Predicated region
    $region34: #{chain_mm.1} parent=1 // pred_check
      _
    $region35: #{chain_mm.1} parent=1 // pred_check_branch
      %154 = sbr.rel (0) target = $region37
    $region36: #{chain_mm.1} parent=1 // pred_region
      %155 = dma.done [#allocation4], 64
    $region37: #{chain_mm.1} parent=1 // pred_fallthru
      _
    %156 = vsyncpa [#allocation3], 1
    %157 = vsyncpa [#allocation6], 1
    %158 = vsyncpa [#allocation4], 1

</llo_original>
